<compile_context>
chip_gen: v5e
topology: v5e:2x2
jax: 0.10.0
libtpu: 0.0.40
codegen_flags: <defaults>
</compile_context>

<pallas_src>
import functools

import jax
import jax.numpy as jnp
from jax.experimental import pallas as pl
from jax.experimental.pallas import tpu as pltpu


# ----------------------------------------------------------------------------
# Fused kernel: one program = one (image n, output channel c2) plane.
#   x_ref:    (1, C1, H, W)  VMEM   NCHW block of one image (W on lanes)
#   w1_ref:   (C1, C2)       SMEM   1x1-conv weight, BN1 scale folded in
#   b1_ref:   (C2,)          SMEM   BN1 shift
#   wdw_ref:  (k*k, C2)      SMEM   depthwise weight, BN2 scale folded in
#   b2_ref:   (C2,)          SMEM   BN2 shift
#   o_ref:    (1, 1, H, W)   VMEM   one output-channel plane
#   ypad_ref: (H+2p, W+2p)   VMEM scratch: zero-padded conv1 plane (the halo)
# ----------------------------------------------------------------------------
def _light_conv_kernel(x_ref, w1_ref, b1_ref, wdw_ref, b2_ref, o_ref, ypad_ref,
                       *, k):
    c2 = pl.program_id(1)
    C1 = x_ref.shape[1]
    H = o_ref.shape[2]
    W = o_ref.shape[3]
    p = k // 2

    # ---- 1x1 conv + BN1 (scale pre-folded into w1): VPU broadcast-MACs -----
    y = jnp.full((H, W), b1_ref[c2], dtype=jnp.float32)
    for c1 in range(C1):                      # static -> unrolled
        y = y + x_ref[0, c1] * w1_ref[c1, c2]

    # ---- depthwise k x k conv + BN2 + ReLU; halo kept in VMEM scratch ------
    # Zero the (tiny) scratch every step (scratch persists across grid steps
    # and each core must re-establish its own zero border), then drop the
    # conv1 plane into the interior. The intermediate never touches HBM.
    ypad_ref[...] = jnp.zeros_like(ypad_ref)
    ypad_ref[pl.ds(p, H), pl.ds(p, W)] = y

    acc = jnp.full((H, W), b2_ref[c2], dtype=jnp.float32)
    for i in range(k):                        # static -> unrolled, k*k taps
        for j in range(k):
            acc = acc + ypad_ref[pl.ds(i, H), pl.ds(j, W)] * wdw_ref[i * k + j, c2]
    o_ref[0, 0] = jnp.maximum(acc, 0.0)


# ----------------------------------------------------------------------------
# LightConv forward: NCHW in / NCHW out (PyTorch convention), no transposes.
# ----------------------------------------------------------------------------
def light_conv_forward(x_nchw, params, k):
    N, C1, H, W = x_nchw.shape
    C2 = params["w1"].shape[1]
    p = k // 2

    # Fold BN scales into the conv weights (pure preprocessing).
    w1 = (params["w1"] * params["scale1"][None, :]).astype(jnp.float32)          # (C1, C2)
    wdw = (params["w_dw"] * params["scale2"][None, None, :]).reshape(k * k, C2)  # (k*k, C2)
    shift1 = params["shift1"].astype(jnp.float32)
    shift2 = params["shift2"].astype(jnp.float32)

    kernel = functools.partial(_light_conv_kernel, k=k)

    return pl.pallas_call(
        kernel,
        out_shape=jax.ShapeDtypeStruct((N, C2, H, W), jnp.float32),
        grid=(N, C2),
        in_specs=[
            # Full NCHW image per program; block index independent of c2, so
            # the image is only DMA'd when n changes.
            pl.BlockSpec((1, C1, H, W), lambda n, c: (n, 0, 0, 0)),
            # Small per-channel parameters: whole arrays in SMEM (scalar loads).
            pl.BlockSpec(memory_space=pltpu.MemorySpace.SMEM),   # w1 (scale folded)
            pl.BlockSpec(memory_space=pltpu.MemorySpace.SMEM),   # shift1
            pl.BlockSpec(memory_space=pltpu.MemorySpace.SMEM),   # w_dw (scale folded)
            pl.BlockSpec(memory_space=pltpu.MemorySpace.SMEM),   # shift2
        ],
        out_specs=pl.BlockSpec((1, 1, H, W), lambda n, c: (n, c, 0, 0)),
        scratch_shapes=[pltpu.VMEM((H + 2 * p, W + 2 * p), jnp.float32)],
        compiler_params=pltpu.CompilerParams(
            dimension_semantics=("parallel", "parallel"),
            vmem_limit_bytes=32 * 1024 * 1024,
        ),
    )(x_nchw, w1, shift1, wdw, shift2)


# ----------------------------------------------------------------------------
# Pure-JAX reference (same math, NCHW) for a correctness check
# ----------------------------------------------------------------------------
def light_conv_reference(x_nchw, params, k):
    H, W = x_nchw.shape[2], x_nchw.shape[3]
    y = jnp.einsum("nchw,cd->ndhw", x_nchw, params["w1"])
    y = y * params["scale1"][None, :, None, None] + params["shift1"][None, :, None, None]
    p = k // 2
    yp = jnp.pad(y, ((0, 0), (0, 0), (p, p), (p, p)))
    acc = jnp.zeros_like(y)
    for i in range(k):
        for j in range(k):
            acc = acc + yp[:, :, i:i + H, j:j + W] * params["w_dw"][i, j, :][None, :, None, None]
    z = acc * params["scale2"][None, :, None, None] + params["shift2"][None, :, None, None]
    return jnp.maximum(z, 0.0)


# ----------------------------------------------------------------------------
# Deterministic parameter construction (shapes follow LightConv.__init__)
# ----------------------------------------------------------------------------
def make_params(key, c1, c2, k, eps=1e-5):
    ks = jax.random.split(key, 10)
    # conv1: nn.Conv2d(c1, c2, 1, bias=False) -> weight (c2, c1, 1, 1); stored as (c1, c2)
    w1 = 0.1 * jax.random.normal(ks[0], (c1, c2), jnp.float32)
    g1 = 1.0 + 0.1 * jax.random.normal(ks[1], (c2,), jnp.float32)
    b1 = 0.1 * jax.random.normal(ks[2], (c2,), jnp.float32)
    m1 = 0.1 * jax.random.normal(ks[3], (c2,), jnp.float32)
    v1 = jnp.abs(jax.random.normal(ks[4], (c2,), jnp.float32)) + 0.5
    scale1 = g1 / jnp.sqrt(v1 + eps)
    shift1 = b1 - m1 * scale1
    # conv2 (DWConv): nn.Conv2d(c2, c2, k, groups=c2, bias=False) -> (c2, 1, k, k); stored as (k, k, c2)
    w_dw = 0.1 * jax.random.normal(ks[5], (k, k, c2), jnp.float32)
    g2 = 1.0 + 0.1 * jax.random.normal(ks[6], (c2,), jnp.float32)
    b2 = 0.1 * jax.random.normal(ks[7], (c2,), jnp.float32)
    m2 = 0.1 * jax.random.normal(ks[8], (c2,), jnp.float32)
    v2 = jnp.abs(jax.random.normal(ks[9], (c2,), jnp.float32)) + 0.5
    scale2 = g2 / jnp.sqrt(v2 + eps)
    shift2 = b2 - m2 * scale2
    return {"w1": w1, "scale1": scale1, "shift1": shift1,
            "w_dw": w_dw, "scale2": scale2, "shift2": shift2}


if __name__ == "__main__":
    key = jax.random.PRNGKey(0)
    kx, kp = jax.random.split(key)

    N, C1, H, W = 2, 4, 16, 16
    C2, K = 8, 3

    x = jax.random.normal(kx, (N, C1, H, W), jnp.float32)  # NCHW like torch
    params = make_params(kp, C1, C2, K)

    out = light_conv_forward(x, params, K)
    out = jax.block_until_ready(out)

    ref = light_conv_reference(x, params, K)
    assert out.shape == (N, C2, H, W)
    assert jnp.max(jnp.abs(out - ref)) < 1e-4

    print("KERNEL_OK")
</pallas_src>

<mosaic_0001>
module attributes {stable_mosaic.version = 11 : i64} {
  func.func @_light_conv_kernel(%arg0: i32, %arg1: i32, %arg2: memref<1x4x16x16xf32, #tpu.memory_space<vmem>>, %arg3: memref<4x8xf32, #tpu.memory_space<smem>>, %arg4: memref<8xf32, #tpu.memory_space<smem>>, %arg5: memref<9x8xf32, #tpu.memory_space<smem>>, %arg6: memref<8xf32, #tpu.memory_space<smem>>, %arg7: memref<1x1x16x16xf32, #tpu.memory_space<vmem>>, %arg8: memref<18x18xf32, #tpu.memory_space<vmem>>) attributes {dimension_semantics = [#tpu.dimension_semantics<parallel>, #tpu.dimension_semantics<parallel>], iteration_bounds = array<i64: 2, 8>, scalar_prefetch = 0 : i64, scratch_operands = 1 : i64, tpu.core_type = #tpu.core_type<tc>, window_params = [{transform_indices = @transform_0, window_bounds = array<i64: 1, 4, 16, 16>}, {transform_indices = @transform_1, window_bounds = array<i64: 4, 8>}, {transform_indices = @transform_2, window_bounds = array<i64: 8>}, {transform_indices = @transform_3, window_bounds = array<i64: 9, 8>}, {transform_indices = @transform_4, window_bounds = array<i64: 8>}, {transform_indices = @transform_5, window_bounds = array<i64: 1, 1, 16, 16>}]} {
    %0 = arith.index_cast %arg1 : i32 to index
    %1 = memref.load %arg4[%0] : memref<8xf32, #tpu.memory_space<smem>>
    %2 = vector.broadcast %1 : f32 to vector<16x16xf32>
    %c0 = arith.constant 0 : index
    %c0_0 = arith.constant 0 : index
    %c0_1 = arith.constant 0 : index
    %c0_2 = arith.constant 0 : index
    %3 = vector.load %arg2[%c0, %c0_0, %c0_1, %c0_2] : memref<1x4x16x16xf32, #tpu.memory_space<vmem>>, vector<1x1x16x16xf32>
    %4 = vector.shape_cast %3 : vector<1x1x16x16xf32> to vector<16x16xf32>
    %c0_3 = arith.constant 0 : index
    %5 = arith.index_cast %arg1 : i32 to index
    %6 = memref.load %arg3[%c0_3, %5] : memref<4x8xf32, #tpu.memory_space<smem>>
    %7 = vector.broadcast %6 : f32 to vector<16x16xf32>
    %8 = arith.mulf %4, %7 : vector<16x16xf32>
    %9 = arith.addf %2, %8 : vector<16x16xf32>
    %c0_4 = arith.constant 0 : index
    %c1 = arith.constant 1 : index
    %c0_5 = arith.constant 0 : index
    %c0_6 = arith.constant 0 : index
    %10 = vector.load %arg2[%c0_4, %c1, %c0_5, %c0_6] : memref<1x4x16x16xf32, #tpu.memory_space<vmem>>, vector<1x1x16x16xf32>
    %11 = vector.shape_cast %10 : vector<1x1x16x16xf32> to vector<16x16xf32>
    %c1_7 = arith.constant 1 : index
    %12 = arith.index_cast %arg1 : i32 to index
    %13 = memref.load %arg3[%c1_7, %12] : memref<4x8xf32, #tpu.memory_space<smem>>
    %14 = vector.broadcast %13 : f32 to vector<16x16xf32>
    %15 = arith.mulf %11, %14 : vector<16x16xf32>
    %16 = arith.addf %9, %15 : vector<16x16xf32>
    %c0_8 = arith.constant 0 : index
    %c2 = arith.constant 2 : index
    %c0_9 = arith.constant 0 : index
    %c0_10 = arith.constant 0 : index
    %17 = vector.load %arg2[%c0_8, %c2, %c0_9, %c0_10] : memref<1x4x16x16xf32, #tpu.memory_space<vmem>>, vector<1x1x16x16xf32>
    %18 = vector.shape_cast %17 : vector<1x1x16x16xf32> to vector<16x16xf32>
    %c2_11 = arith.constant 2 : index
    %19 = arith.index_cast %arg1 : i32 to index
    %20 = memref.load %arg3[%c2_11, %19] : memref<4x8xf32, #tpu.memory_space<smem>>
    %21 = vector.broadcast %20 : f32 to vector<16x16xf32>
    %22 = arith.mulf %18, %21 : vector<16x16xf32>
    %23 = arith.addf %16, %22 : vector<16x16xf32>
    %c0_12 = arith.constant 0 : index
    %c3 = arith.constant 3 : index
    %c0_13 = arith.constant 0 : index
    %c0_14 = arith.constant 0 : index
    %24 = vector.load %arg2[%c0_12, %c3, %c0_13, %c0_14] : memref<1x4x16x16xf32, #tpu.memory_space<vmem>>, vector<1x1x16x16xf32>
    %25 = vector.shape_cast %24 : vector<1x1x16x16xf32> to vector<16x16xf32>
    %c3_15 = arith.constant 3 : index
    %26 = arith.index_cast %arg1 : i32 to index
    %27 = memref.load %arg3[%c3_15, %26] : memref<4x8xf32, #tpu.memory_space<smem>>
    %28 = vector.broadcast %27 : f32 to vector<16x16xf32>
    %29 = arith.mulf %25, %28 : vector<16x16xf32>
    %30 = arith.addf %23, %29 : vector<16x16xf32>
    %cst = arith.constant 0.000000e+00 : f32
    %31 = vector.broadcast %cst : f32 to vector<18x18xf32>
    %c0_16 = arith.constant 0 : index
    %c0_17 = arith.constant 0 : index
    %32 = vector.load %arg8[%c0_16, %c0_17] : memref<18x18xf32, #tpu.memory_space<vmem>>, vector<18x18xf32>
    tpu.vector_store %arg8[%c0_16, %c0_17], %31 {strides = array<i32>} : memref<18x18xf32, #tpu.memory_space<vmem>>, vector<18x18xf32>,
    %c1_18 = arith.constant 1 : index
    %c1_19 = arith.constant 1 : index
    %33 = vector.load %arg8[%c1_18, %c1_19] : memref<18x18xf32, #tpu.memory_space<vmem>>, vector<16x16xf32>
    tpu.vector_store %arg8[%c1_18, %c1_19], %30 {strides = array<i32>} : memref<18x18xf32, #tpu.memory_space<vmem>>, vector<16x16xf32>,
    %34 = arith.index_cast %arg1 : i32 to index
    %35 = memref.load %arg6[%34] : memref<8xf32, #tpu.memory_space<smem>>
    %36 = vector.broadcast %35 : f32 to vector<16x16xf32>
    %c0_20 = arith.constant 0 : index
    %c0_21 = arith.constant 0 : index
    %37 = vector.load %arg8[%c0_20, %c0_21] : memref<18x18xf32, #tpu.memory_space<vmem>>, vector<16x16xf32>
    %c0_22 = arith.constant 0 : index
    %38 = arith.index_cast %arg1 : i32 to index
    %39 = memref.load %arg5[%c0_22, %38] : memref<9x8xf32, #tpu.memory_space<smem>>
    %40 = vector.broadcast %39 : f32 to vector<16x16xf32>
    %41 = arith.mulf %37, %40 : vector<16x16xf32>
    %42 = arith.addf %36, %41 : vector<16x16xf32>
    %c0_23 = arith.constant 0 : index
    %c1_24 = arith.constant 1 : index
    %43 = vector.load %arg8[%c0_23, %c1_24] : memref<18x18xf32, #tpu.memory_space<vmem>>, vector<16x16xf32>
    %c1_25 = arith.constant 1 : index
    %44 = arith.index_cast %arg1 : i32 to index
    %45 = memref.load %arg5[%c1_25, %44] : memref<9x8xf32, #tpu.memory_space<smem>>
    %46 = vector.broadcast %45 : f32 to vector<16x16xf32>
    %47 = arith.mulf %43, %46 : vector<16x16xf32>
    %48 = arith.addf %42, %47 : vector<16x16xf32>
    %c0_26 = arith.constant 0 : index
    %c2_27 = arith.constant 2 : index
    %49 = vector.load %arg8[%c0_26, %c2_27] : memref<18x18xf32, #tpu.memory_space<vmem>>, vector<16x16xf32>
    %c2_28 = arith.constant 2 : index
    %50 = arith.index_cast %arg1 : i32 to index
    %51 = memref.load %arg5[%c2_28, %50] : memref<9x8xf32, #tpu.memory_space<smem>>
    %52 = vector.broadcast %51 : f32 to vector<16x16xf32>
    %53 = arith.mulf %49, %52 : vector<16x16xf32>
    %54 = arith.addf %48, %53 : vector<16x16xf32>
    %c1_29 = arith.constant 1 : index
    %c0_30 = arith.constant 0 : index
    %55 = vector.load %arg8[%c1_29, %c0_30] : memref<18x18xf32, #tpu.memory_space<vmem>>, vector<16x16xf32>
    %c3_31 = arith.constant 3 : index
    %56 = arith.index_cast %arg1 : i32 to index
    %57 = memref.load %arg5[%c3_31, %56] : memref<9x8xf32, #tpu.memory_space<smem>>
    %58 = vector.broadcast %57 : f32 to vector<16x16xf32>
    %59 = arith.mulf %55, %58 : vector<16x16xf32>
    %60 = arith.addf %54, %59 : vector<16x16xf32>
    %c1_32 = arith.constant 1 : index
    %c1_33 = arith.constant 1 : index
    %61 = vector.load %arg8[%c1_32, %c1_33] : memref<18x18xf32, #tpu.memory_space<vmem>>, vector<16x16xf32>
    %c4 = arith.constant 4 : index
    %62 = arith.index_cast %arg1 : i32 to index
    %63 = memref.load %arg5[%c4, %62] : memref<9x8xf32, #tpu.memory_space<smem>>
    %64 = vector.broadcast %63 : f32 to vector<16x16xf32>
    %65 = arith.mulf %61, %64 : vector<16x16xf32>
    %66 = arith.addf %60, %65 : vector<16x16xf32>
    %c1_34 = arith.constant 1 : index
    %c2_35 = arith.constant 2 : index
    %67 = vector.load %arg8[%c1_34, %c2_35] : memref<18x18xf32, #tpu.memory_space<vmem>>, vector<16x16xf32>
    %c5 = arith.constant 5 : index
    %68 = arith.index_cast %arg1 : i32 to index
    %69 = memref.load %arg5[%c5, %68] : memref<9x8xf32, #tpu.memory_space<smem>>
    %70 = vector.broadcast %69 : f32 to vector<16x16xf32>
    %71 = arith.mulf %67, %70 : vector<16x16xf32>
    %72 = arith.addf %66, %71 : vector<16x16xf32>
    %c2_36 = arith.constant 2 : index
    %c0_37 = arith.constant 0 : index
    %73 = vector.load %arg8[%c2_36, %c0_37] : memref<18x18xf32, #tpu.memory_space<vmem>>, vector<16x16xf32>
    %c6 = arith.constant 6 : index
    %74 = arith.index_cast %arg1 : i32 to index
    %75 = memref.load %arg5[%c6, %74] : memref<9x8xf32, #tpu.memory_space<smem>>
    %76 = vector.broadcast %75 : f32 to vector<16x16xf32>
    %77 = arith.mulf %73, %76 : vector<16x16xf32>
    %78 = arith.addf %72, %77 : vector<16x16xf32>
    %c2_38 = arith.constant 2 : index
    %c1_39 = arith.constant 1 : index
    %79 = vector.load %arg8[%c2_38, %c1_39] : memref<18x18xf32, #tpu.memory_space<vmem>>, vector<16x16xf32>
    %c7 = arith.constant 7 : index
    %80 = arith.index_cast %arg1 : i32 to index
    %81 = memref.load %arg5[%c7, %80] : memref<9x8xf32, #tpu.memory_space<smem>>
    %82 = vector.broadcast %81 : f32 to vector<16x16xf32>
    %83 = arith.mulf %79, %82 : vector<16x16xf32>
    %84 = arith.addf %78, %83 : vector<16x16xf32>
    %c2_40 = arith.constant 2 : index
    %c2_41 = arith.constant 2 : index
    %85 = vector.load %arg8[%c2_40, %c2_41] : memref<18x18xf32, #tpu.memory_space<vmem>>, vector<16x16xf32>
    %c8 = arith.constant 8 : index
    %86 = arith.index_cast %arg1 : i32 to index
    %87 = memref.load %arg5[%c8, %86] : memref<9x8xf32, #tpu.memory_space<smem>>
    %88 = vector.broadcast %87 : f32 to vector<16x16xf32>
    %89 = arith.mulf %85, %88 : vector<16x16xf32>
    %90 = arith.addf %84, %89 : vector<16x16xf32>
    %cst_42 = arith.constant 0.000000e+00 : f32
    %91 = vector.broadcast %cst_42 : f32 to vector<16x16xf32>
    %92 = arith.maximumf %90, %91 : vector<16x16xf32>
    %c0_43 = arith.constant 0 : index
    %c0_44 = arith.constant 0 : index
    %c0_45 = arith.constant 0 : index
    %c0_46 = arith.constant 0 : index
    %93 = vector.load %arg7[%c0_43, %c0_44, %c0_45, %c0_46] : memref<1x1x16x16xf32, #tpu.memory_space<vmem>>, vector<1x1x16x16xf32>
    %94 = vector.shape_cast %93 : vector<1x1x16x16xf32> to vector<16x16xf32>
    %95 = vector.shape_cast %92 : vector<16x16xf32> to vector<1x1x16x16xf32>
    tpu.vector_store %arg7[%c0_43, %c0_44, %c0_45, %c0_46], %95 {strides = array<i32>} : memref<1x1x16x16xf32, #tpu.memory_space<vmem>>, vector<1x1x16x16xf32>,
    return
  }
  func.func @transform_0(%arg0: i32, %arg1: i32) -> (i32, i32, i32, i32) {
    %c0_i32 = arith.constant 0 : i32
    %c0_i32_0 = arith.constant 0 : i32
    %c0_i32_1 = arith.constant 0 : i32
    %c0_i32_2 = arith.constant 0 : i32
    return %arg0, %c0_i32, %c0_i32_0, %c0_i32_1 : i32, i32, i32, i32
  }
  func.func @transform_1(%arg0: i32, %arg1: i32) -> (i32, i32) {
    %c0_i32 = arith.constant 0 : i32
    %c0_i32_0 = arith.constant 0 : i32
    %c0_i32_1 = arith.constant 0 : i32
    return %c0_i32, %c0_i32_0 : i32, i32
  }
  func.func @transform_2(%arg0: i32, %arg1: i32) -> i32 {
    %c0_i32 = arith.constant 0 : i32
    %c0_i32_0 = arith.constant 0 : i32
    return %c0_i32 : i32
  }
  func.func @transform_3(%arg0: i32, %arg1: i32) -> (i32, i32) {
    %c0_i32 = arith.constant 0 : i32
    %c0_i32_0 = arith.constant 0 : i32
    %c0_i32_1 = arith.constant 0 : i32
    return %c0_i32, %c0_i32_0 : i32, i32
  }
  func.func @transform_4(%arg0: i32, %arg1: i32) -> i32 {
    %c0_i32 = arith.constant 0 : i32
    %c0_i32_0 = arith.constant 0 : i32
    return %c0_i32 : i32
  }
  func.func @transform_5(%arg0: i32, %arg1: i32) -> (i32, i32, i32, i32) {
    %c0_i32 = arith.constant 0 : i32
    %c0_i32_0 = arith.constant 0 : i32
    %c0_i32_1 = arith.constant 0 : i32
    return %arg0, %arg1, %c0_i32, %c0_i32_0 : i32, i32, i32, i32
  }
}

</mosaic_0001>

<llo_original>
// kernel: tpu_custom_call.1
$region0: #{tpu_custom_call.1}
  #allocation0 [shape = 'u32[]', space=smem, size = 0x4, offset = 0x4, fixed_abs, tag = 'smem constant byte address 0x4 - core index']
  #allocation1 [shape = 'u32[72,128]{1,0:T(1,128)}', space=vmem, size = 0x9000, scoped, tag = 'internal scratch']
  #allocation2 [shape = 'f32[18,18]{1,0:T(8,128)}', space=vmem, size = 0x3000, scoped, tag = 'scratch operand']
  %s0 = inlined_call_operand.hbm [shape: f32[2,4,16,16], index: 0, kind: input, shape index: {}]
  %s1 = inlined_call_operand.vmem [shape: f32[4,8], index: 1, kind: input, shape index: {}]
  %s2 = inlined_call_operand.vmem [shape: f32[8], index: 2, kind: input, shape index: {}]
  %s3 = inlined_call_operand.vmem [shape: f32[9,8], index: 3, kind: input, shape index: {}]
  %s4 = inlined_call_operand.vmem [shape: f32[8], index: 4, kind: input, shape index: {}]
  %s5 = inlined_call_operand.hbm [shape: f32[2,8,16,16], index: 5, kind: output, shape index: {}]
  %s6 = sld [smem:[#allocation0]]
  $region73: #{tpu_custom_call.1} parent=0
    _
  %s8 = ssub.s32 1, %s6
  %s9 = scalar_select 0, %s8, %s6
  $region1: #{tpu_custom_call.1} parent=0
    #allocation3 [shape = 'u8[65536]{0}', space=vmem, size = 0x10000, scoped, tag = 'input window, operand 0']
    #allocation4 [shape = 's32[2]{0}', space=sflag, size = 0x8, scoped, tag = 'scoped memory for tpu_custom_call.1']
    #allocation5 [shape = 's32[2]{0}', space=sflag, size = 0x8, scoped, tag = 'scoped memory for tpu_custom_call.1']
    #allocation6 [shape = 's32[2]{0}', space=sflag, size = 0x8, scoped, tag = 'scoped memory for tpu_custom_call.1']
    #allocation7 [shape = 'u8[2048]{0}', space=smem, size = 0x800, scoped, tag = 'input window, operand 1, single buffered']
    #allocation8 [shape = 'u8[512]{0}', space=smem, size = 0x200, scoped, tag = 'input window, operand 2, single buffered']
    #allocation9 [shape = 's32[1]{0}', space=sflag, size = 0x4, scoped, tag = 'scoped memory for tpu_custom_call.1']
    #allocation10 [shape = 'u8[8192]{0}', space=smem, size = 0x2000, scoped, tag = 'input window, operand 3, single buffered']
    #allocation11 [shape = 'u8[512]{0}', space=smem, size = 0x200, scoped, tag = 'input window, operand 4, single buffered']
    #allocation12 [shape = 's32[1]{0}', space=sflag, size = 0x4, scoped, tag = 'scoped memory for tpu_custom_call.1']
    #allocation13 [shape = 'u8[16384]{0}', space=vmem, size = 0x4000, scoped, tag = 'output window, operand 0']
    %10 = vsyncpa [#allocation4], 0
    %s11 = scalar_lea.sflag [#allocation4], 1
    %12 = vsyncpa %s11, 0
    %13 = vsyncpa [#allocation6], 0
    %14 = vsyncpa [#allocation9], 0
    %15 = vsyncpa [#allocation12], 0
    %16 = vsyncpa [#allocation5], 0
    %s17 = scalar_lea.sflag [#allocation5], 1
    %18 = vsyncpa %s17, 0
    loop: start=0, step=1, limit=18
    $region2: #{tpu_custom_call.1} parent=1 // loop_pre_header
      _
    $region3: #{tpu_custom_call.1} parent=1 // loop_header
      %s20 = sphi 0, %s24
      %p21 = scmp.ge.s32.totalorder %s20, 18
      %s27 = sphi 0, %s39
      %s28 = sphi 0, %s35
      %s29 = sphi 0, %s27
      %s30 = sphi 0, %s28
      %s31 = sphi 0, %s29
      %s32 = sphi 0, %s30
      %s42 = sphi 0, %s44
      %s45 = sphi 0, %s42
      %s46 = sphi 0, %s45
      %s62 = sphi 0, %s46
      %s66 = sphi 0, %s66
      %s68 = sphi 0, %s66
      %s69 = sphi 0, %s68
      %s83 = sphi 0, %s69
      %s87 = sphi 0, %s87
      %s89 = sphi 0, %s87
      %s90 = sphi 0, %s89
      %s104 = sphi 0, %s90
      %s108 = sphi 0, %s108
      %s110 = sphi 0, %s108
      %s111 = sphi 0, %s110
      %s125 = sphi 0, %s111
      %s129 = sphi 0, %s129
      %s131 = sphi 0, %s129
      %s132 = sphi 0, %s131
      %s146 = sphi 0, %s132
      %s154 = sphi 0, %s156
      %s157 = sphi 0, %s154
      %s158 = sphi 0, %s157
      %s174 = sphi 0, %s158
    $region4: #{tpu_custom_call.1} parent=1 // loop_header_branch
      %23 = sbr.rel (%p21) target = $region8
    $region5: #{tpu_custom_call.1} parent=1 // loop_body
      %s25 = ssub.s32 %s20, 1
      %s26 = ssub.s32 %s20, 2
      %s33 = sadd.s32 1, %s28
      %p34 = scmp.ge.s32.totalorder %s33, 8
      %s35 = scalar_select %p34, 0, %s33
      %s36 = sadd.s32 1, %s27
      %s37 = scalar_select %p34, %s36, %s27
      %p38 = scmp.ge.s32.totalorder %s37, 2
      %s39 = scalar_select %p38, 0, %s37
      %s40 = ssub.s32 %s27, %s39
      %p41 = scmp.eq.s32.totalorder %s40, 0
      %s43 = sadd.s32 %s42, 1
      %s44 = scalar_select %p41, %s42, %s43
      %p47 = pneg %p41
      %p48 = scmp.eq.s32.totalorder %s20, 15
      %p49 = por %p47, %p48
      %p50 = scmp.ne.s32.totalorder %s42, %s45
      %p51 = scmp.eq.s32.totalorder %s20, 0
      %p52 = por %p50, %p51
      %p53 = scmp.ne.s32.totalorder %s42, %s45
      %p54 = scmp.eq.s32.totalorder %s25, 15
      %p55 = por %p53, %p54
      %p56 = scmp.ne.s32.totalorder %s45, %s46
      %p57 = scmp.eq.s32.totalorder %s25, 0
      %p58 = por %p56, %p57
      %p59 = scmp.ne.s32.totalorder %s45, %s46
      %p60 = scmp.eq.s32.totalorder %s26, 15
      %p61 = por %p59, %p60
      %p63 = scmp.ne.s32.totalorder %s46, %s62
      %p64 = scmp.eq.s32.totalorder %s26, 0
      %p65 = por %p63, %p64
      %s67 = sadd.s32 %s66, 1
      %p70 = scmp.eq.s32.totalorder %s20, 15
      %p71 = scmp.ne.s32.totalorder %s66, %s68
      %p72 = scmp.eq.s32.totalorder %s20, 0
      %p73 = por %p71, %p72
      %p74 = scmp.ne.s32.totalorder %s66, %s68
      %p75 = scmp.eq.s32.totalorder %s25, 15
      %p76 = por %p74, %p75
      %p77 = scmp.ne.s32.totalorder %s68, %s69
      %p78 = scmp.eq.s32.totalorder %s25, 0
      %p79 = por %p77, %p78
      %p80 = scmp.ne.s32.totalorder %s68, %s69
      %p81 = scmp.eq.s32.totalorder %s26, 15
      %p82 = por %p80, %p81
      %p84 = scmp.ne.s32.totalorder %s69, %s83
      %p85 = scmp.eq.s32.totalorder %s26, 0
      %p86 = por %p84, %p85
      %s88 = sadd.s32 %s87, 1
      %p91 = scmp.eq.s32.totalorder %s20, 15
      %p92 = scmp.ne.s32.totalorder %s87, %s89
      %p93 = scmp.eq.s32.totalorder %s20, 0
      %p94 = por %p92, %p93
      %p95 = scmp.ne.s32.totalorder %s87, %s89
      %p96 = scmp.eq.s32.totalorder %s25, 15
      %p97 = por %p95, %p96
      %p98 = scmp.ne.s32.totalorder %s89, %s90
      %p99 = scmp.eq.s32.totalorder %s25, 0
      %p100 = por %p98, %p99
      %p101 = scmp.ne.s32.totalorder %s89, %s90
      %p102 = scmp.eq.s32.totalorder %s26, 15
      %p103 = por %p101, %p102
      %p105 = scmp.ne.s32.totalorder %s90, %s104
      %p106 = scmp.eq.s32.totalorder %s26, 0
      %p107 = por %p105, %p106
      %s109 = sadd.s32 %s108, 1
      %p112 = scmp.eq.s32.totalorder %s20, 15
      %p113 = scmp.ne.s32.totalorder %s108, %s110
      %p114 = scmp.eq.s32.totalorder %s20, 0
      %p115 = por %p113, %p114
      %p116 = scmp.ne.s32.totalorder %s108, %s110
      %p117 = scmp.eq.s32.totalorder %s25, 15
      %p118 = por %p116, %p117
      %p119 = scmp.ne.s32.totalorder %s110, %s111
      %p120 = scmp.eq.s32.totalorder %s25, 0
      %p121 = por %p119, %p120
      %p122 = scmp.ne.s32.totalorder %s110, %s111
      %p123 = scmp.eq.s32.totalorder %s26, 15
      %p124 = por %p122, %p123
      %p126 = scmp.ne.s32.totalorder %s111, %s125
      %p127 = scmp.eq.s32.totalorder %s26, 0
      %p128 = por %p126, %p127
      %s130 = sadd.s32 %s129, 1
      %p133 = scmp.eq.s32.totalorder %s20, 15
      %p134 = scmp.ne.s32.totalorder %s129, %s131
      %p135 = scmp.eq.s32.totalorder %s20, 0
      %p136 = por %p134, %p135
      %p137 = scmp.ne.s32.totalorder %s129, %s131
      %p138 = scmp.eq.s32.totalorder %s25, 15
      %p139 = por %p137, %p138
      %p140 = scmp.ne.s32.totalorder %s131, %s132
      %p141 = scmp.eq.s32.totalorder %s25, 0
      %p142 = por %p140, %p141
      %p143 = scmp.ne.s32.totalorder %s131, %s132
      %p144 = scmp.eq.s32.totalorder %s26, 15
      %p145 = por %p143, %p144
      %p147 = scmp.ne.s32.totalorder %s132, %s146
      %p148 = scmp.eq.s32.totalorder %s26, 0
      %p149 = por %p147, %p148
      %s150 = ssub.s32 %s27, %s39
      %s151 = ssub.s32 %s28, %s35
      %s152 = sor.u32 %s150, %s151
      %p153 = scmp.eq.s32.totalorder %s152, 0
      %s155 = sadd.s32 %s154, 1
      %s156 = scalar_select %p153, %s154, %s155
      %p159 = pneg %p153
      %p160 = scmp.eq.s32.totalorder %s20, 15
      %p161 = por %p159, %p160
      %p162 = scmp.ne.s32.totalorder %s154, %s157
      %p163 = scmp.eq.s32.totalorder %s20, 0
      %p164 = por %p162, %p163
      %p165 = scmp.ne.s32.totalorder %s154, %s157
      %p166 = scmp.eq.s32.totalorder %s25, 15
      %p167 = por %p165, %p166
      %p168 = scmp.ne.s32.totalorder %s157, %s158
      %p169 = scmp.eq.s32.totalorder %s25, 0
      %p170 = por %p168, %p169
      %p171 = scmp.ne.s32.totalorder %s157, %s158
      %p172 = scmp.eq.s32.totalorder %s26, 15
      %p173 = por %p171, %p172
      %p175 = scmp.ne.s32.totalorder %s158, %s174
      %p176 = scmp.eq.s32.totalorder %s26, 0
      %p177 = por %p175, %p176
      %p178 = scmp.le.s32.totalorder 1, %s20
      %p179 = scmp.lt.s32.totalorder %s20, 17
      %p180 = pnand %p178, %p179
      %p181 = pneg %p180
      // Predicated region
      $region9: #{tpu_custom_call.1} parent=5 // pred_check
        _
      $region10: #{tpu_custom_call.1} parent=5 // pred_check_branch
        %183 = sbr.rel (%p180) target = $region12
      $region11: #{tpu_custom_call.1} parent=5 // pred_region
        %s184 = ssub.s32 %s20, 1
        // Predicated region
        $region13: #{tpu_custom_call.1} parent=11 // pred_check
          %p185 = pneg %p79
        $region14: #{tpu_custom_call.1} parent=11 // pred_check_branch
          %187 = sbr.rel (%p185) target = $region16
        $region15: #{tpu_custom_call.1} parent=11 // pred_region
          %189 = vsyncadd [#allocation6], 0
          %s191 = sshll.u32 %s1, 4
          %s192 = int_to_ptr.vmem [resolvable:$true] %s191
          %194 = dma.vmem_to_smem %s192, 64, [#allocation7], [#allocation6]
        $region16: #{tpu_custom_call.1} parent=11 // pred_fallthru
          _
        // Predicated region
        $region17: #{tpu_custom_call.1} parent=11 // pred_check
          %p195 = pneg %p100
        $region18: #{tpu_custom_call.1} parent=11 // pred_check_branch
          %197 = sbr.rel (%p195) target = $region20
        $region19: #{tpu_custom_call.1} parent=11 // pred_region
          %199 = vsyncadd [#allocation9], 0
          %s201 = sshll.u32 %s2, 4
          %s202 = int_to_ptr.vmem [resolvable:$true] %s201
          %204 = dma.vmem_to_smem %s202, 16, [#allocation8], [#allocation9]
        $region20: #{tpu_custom_call.1} parent=11 // pred_fallthru
          _
        // Predicated region
        $region21: #{tpu_custom_call.1} parent=11 // pred_check
          %p205 = pneg %p121
        $region22: #{tpu_custom_call.1} parent=11 // pred_check_branch
          %207 = sbr.rel (%p205) target = $region24
        $region23: #{tpu_custom_call.1} parent=11 // pred_region
          %209 = vsyncadd [#allocation9], 0
          %s210 = sshll.u32 %s3, 4
          %s211 = int_to_ptr.vmem [resolvable:$true] %s210
          %216 = dma.vmem_to_smem %s211, 256, [#allocation10], [#allocation9], 128, 128, 8
        $region24: #{tpu_custom_call.1} parent=11 // pred_fallthru
          _
        // Predicated region
        $region25: #{tpu_custom_call.1} parent=11 // pred_check
          %p217 = pneg %p142
        $region26: #{tpu_custom_call.1} parent=11 // pred_check_branch
          %219 = sbr.rel (%p217) target = $region28
        $region27: #{tpu_custom_call.1} parent=11 // pred_region
          %221 = vsyncadd [#allocation12], 0
          %s223 = sshll.u32 %s4, 4
          %s224 = int_to_ptr.vmem [resolvable:$true] %s223
          %226 = dma.vmem_to_smem %s224, 16, [#allocation11], [#allocation12]
        $region28: #{tpu_custom_call.1} parent=11 // pred_fallthru
          _
      $region12: #{tpu_custom_call.1} parent=5 // pred_fallthru
        _
      %p227 = scmp.lt.s32.totalorder %s20, 16
      // Predicated region
      $region29: #{tpu_custom_call.1} parent=5 // pred_check
        %p228 = pneg %p227
      $region30: #{tpu_custom_call.1} parent=5 // pred_check_branch
        %230 = sbr.rel (%p228) target = $region32
      $region31: #{tpu_custom_call.1} parent=5 // pred_region
        // Predicated region
        $region33: #{tpu_custom_call.1} parent=31 // pred_check
          %p231 = pneg %p52
        $region34: #{tpu_custom_call.1} parent=31 // pred_check_branch
          %233 = sbr.rel (%p231) target = $region36
        $region35: #{tpu_custom_call.1} parent=31 // pred_region
          %s234 = sand.u32 %s42, 1
          %s235 = scalar_lea.sflag [#allocation4], %s234
          %s236 = sand.u32 %s42, 1
          %s237 = smul.addr %s236, 64
          %s238 = scalar_lea.vmem [#allocation3], %s237
          %240 = vsyncadd %s235, 0
          %s241 = smul.addr %s27, 8
          %s242 = smul.addr %s241, 8
          %s243 = scalar_lea.hbm %s0, %s242
          %s244 = sshll.u32 %s243, 4
          %s245 = int_to_ptr.hbm [resolvable:$true] %s244
          %s246 = sshll.u32 %s238, 4
          %s247 = int_to_ptr.vmem [resolvable:$true] %s246
          %252 = dma.hbm_to_vmem [thread:$0]  %s245, 1024, %s247, %s235, 128, 128, 8
        $region36: #{tpu_custom_call.1} parent=31 // pred_fallthru
          _
      $region32: #{tpu_custom_call.1} parent=5 // pred_fallthru
        _
      %p253 = scmp.le.s32.totalorder 1, %s20
      %p254 = scmp.lt.s32.totalorder %s20, 17
      %p255 = pnand %p253, %p254
      %p256 = pneg %p255
      // Predicated region
      $region37: #{tpu_custom_call.1} parent=5 // pred_check
        _
      $region38: #{tpu_custom_call.1} parent=5 // pred_check_branch
        %258 = sbr.rel (%p255) target = $region40
      $region39: #{tpu_custom_call.1} parent=5 // pred_region
        %s259 = ssub.s32 %s20, 1
        %s260 = sand.u32 %s45, 1
        %s261 = scalar_lea.sflag [#allocation4], %s260
        %s262 = sand.u32 %s45, 1
        %s263 = smul.addr %s262, 64
        %s264 = scalar_lea.vmem [#allocation3], %s263
        // Predicated region
        $region41: #{tpu_custom_call.1} parent=39 // pred_check
          %p265 = pneg %p58
        $region42: #{tpu_custom_call.1} parent=39 // pred_check_branch
          %267 = sbr.rel (%p265) target = $region44
        $region43: #{tpu_custom_call.1} parent=39 // pred_region
          %269 = dma.done %s261, 1024
        $region44: #{tpu_custom_call.1} parent=39 // pred_fallthru
          _
        // Predicated region
        $region45: #{tpu_custom_call.1} parent=39 // pred_check
          %p270 = pneg %p79
        $region46: #{tpu_custom_call.1} parent=39 // pred_check_branch
          %272 = sbr.rel (%p270) target = $region48
        $region47: #{tpu_custom_call.1} parent=39 // pred_region
          %274 = dma.done [#allocation6], 64
        $region48: #{tpu_custom_call.1} parent=39 // pred_fallthru
          _
        // Predicated region
        $region49: #{tpu_custom_call.1} parent=39 // pred_check
          %p275 = pneg %p100
        $region50: #{tpu_custom_call.1} parent=39 // pred_check_branch
          %277 = sbr.rel (%p275) target = $region52
        $region51: #{tpu_custom_call.1} parent=39 // pred_region
          %279 = dma.done [#allocation9], 16
        $region52: #{tpu_custom_call.1} parent=39 // pred_fallthru
          _
        // Predicated region
        $region53: #{tpu_custom_call.1} parent=39 // pred_check
          %p280 = pneg %p121
        $region54: #{tpu_custom_call.1} parent=39 // pred_check_branch
          %282 = sbr.rel (%p280) target = $region56
        $region55: #{tpu_custom_call.1} parent=39 // pred_region
          %284 = dma.done [#allocation9], 256
        $region56: #{tpu_custom_call.1} parent=39 // pred_fallthru
          _
        // Predicated region
        $region57: #{tpu_custom_call.1} parent=39 // pred_check
          %p285 = pneg %p142
        $region58: #{tpu_custom_call.1} parent=39 // pred_check_branch
          %287 = sbr.rel (%p285) target = $region60
        $region59: #{tpu_custom_call.1} parent=39 // pred_region
          %289 = dma.done [#allocation12], 16
        $region60: #{tpu_custom_call.1} parent=39 // pred_fallthru
          _
        %290 = sfence
        %s291 = sand.u32 %s45, 1
        %s292 = scalar_lea.sflag [#allocation4], %s291
        %s293 = sand.u32 %s45, 1
        %s294 = smul.addr %s293, 64
        %s295 = scalar_lea.vmem [#allocation3], %s294
        %p296 = pneg %p58
        %p297 = pneg %p55
        %p298 = pneg %p79
        %p299 = pneg %p76
        %p300 = pneg %p100
        %p301 = pneg %p97
        %p302 = pneg %p121
        %p303 = pneg %p118
        %p304 = pneg %p142
        %p305 = pneg %p139
        %p306 = pneg %p170
        %p307 = pneg %p167
        %s308 = sand.u32 %s157, 1
        %s309 = scalar_lea.sflag [#allocation5], %s308
        %s310 = sand.u32 %s157, 1
        %s311 = smul.addr %s310, 16
        %s312 = scalar_lea.vmem [#allocation13], %s311
        %s313 = sld [smem:[#allocation8 + %s30]]
        %v314 = vstv %s313
        %v315 = vld [vmem:[%s264] sm:$0xff]
        %v316 = vld [vmem:[%s264 + $0x8] sm:$0xff]
        %s317 = sld [smem:[#allocation7 + %s30]]
        %v318 = vstv %s317
        %v319 = vmul.f32 %v315, %v318
        %v320 = vmul.f32 %v316, %v318
        %v321 = vadd.f32 %v314, %v319
        %v322 = vadd.f32 %v314, %v320
        %s323 = scalar_lea.vmem %s264, 16 [#allocation3]
        %v324 = vld [vmem:[%s323] sm:$0xff]
        %v325 = vld [vmem:[%s323 + $0x8] sm:$0xff]
        %s326 = sshra.s32 %s30, 7
        %s327 = sand.u32 %s30, 127
        %s328 = sadd.s32 %s326, 1
        %s329 = smul.u32 %s328, 128
        %s330 = sshra.s32 %s30, 7
        %s331 = sand.u32 %s30, 127
        %s332 = sadd.s32 %s329, %s331
        %s333 = sld [smem:[#allocation7 + %s332]]
        %v334 = vstv %s333
        %v335 = vmul.f32 %v324, %v334
        %v336 = vmul.f32 %v325, %v334
        %v337 = vadd.f32 %v321, %v335
        %v338 = vadd.f32 %v322, %v336
        %s339 = scalar_lea.vmem %s264, 32 [#allocation3]
        %v340 = vld [vmem:[%s339] sm:$0xff]
        %v341 = vld [vmem:[%s339 + $0x8] sm:$0xff]
        %s342 = sadd.s32 %s326, 2
        %s343 = smul.u32 %s342, 128
        %s344 = sadd.s32 %s343, %s331
        %s345 = sld [smem:[#allocation7 + %s344]]
        %v346 = vstv %s345
        %v347 = vmul.f32 %v340, %v346
        %v348 = vmul.f32 %v341, %v346
        %v349 = vadd.f32 %v337, %v347
        %v350 = vadd.f32 %v338, %v348
        %s351 = scalar_lea.vmem %s264, 48 [#allocation3]
        %v352 = vld [vmem:[%s351] sm:$0xff]
        %v353 = vld [vmem:[%s351 + $0x8] sm:$0xff]
        %s354 = sadd.s32 %s326, 3
        %s355 = smul.u32 %s354, 128
        %s356 = sadd.s32 %s355, %s331
        %s357 = sld [smem:[#allocation7 + %s356]]
        %v358 = vstv %s357
        %v359 = vmul.f32 %v352, %v358
        %v360 = vmul.f32 %v353, %v358
        %v361 = vadd.f32 %v349, %v359
        %v362 = vadd.f32 %v350, %v360
        %vm363 = vcmask 146432
        %364 = vst.msk [vmem:[#allocation2] sm:$0xff] %vm363, 0.0
        %365 = vst.msk [vmem:[#allocation2 + $0x8] sm:$0xff] %vm363, 0.0
        %vm366 = vcmask 140288
        %367 = vst.msk [vmem:[#allocation2 + $0x10] sm:$0x3] %vm366, 0.0
        %370 = vrot.lane.b32.xlu0 %v361, 1
        %v371 = vpop.permute.xlu0 %370
        %372 = vrot.lane.b32.xlu0 %v362, 1
        %v373 = vpop.permute.xlu0 %372
        %vm376 = vcmask 138248
        %377 = vst.msk [vmem:[#allocation2 + $0x1] sm:$0xff] %vm376, %v371
        %378 = vst.msk [vmem:[#allocation2 + $0x9] sm:$0xff] %vm376, %v373
        %s379 = sld [smem:[#allocation11 + %s30]]
        %v380 = vstv %s379
        %v381 = vld [vmem:[#allocation2] sm:$0xff]
        %v382 = vld [vmem:[#allocation2 + $0x8] sm:$0xff]
        %s383 = sld [smem:[#allocation10 + %s30]]
        %v384 = vstv %s383
        %v385 = vmul.f32 %v381, %v384
        %v386 = vmul.f32 %v382, %v384
        %v387 = vadd.f32 %v380, %v385
        %v388 = vadd.f32 %v380, %v386
        %s389 = sld [smem:[#allocation10 + %s332]]
        %v390 = vstv %s389
        %v391 = vmul.f32 %v381, %v390
        %v392 = vmul.f32 %v382, %v390
        %395 = vrot.lane.b32.xlu0 %v391, 127
        %v396 = vpop.permute.xlu0 %395
        %397 = vrot.lane.b32.xlu0 %v392, 127
        %v398 = vpop.permute.xlu0 %397
        %v401 = vadd.f32 %v387, %v396
        %v402 = vadd.f32 %v388, %v398
        %s403 = sld [smem:[#allocation10 + %s344]]
        %v404 = vstv %s403
        %v405 = vmul.f32 %v381, %v404
        %v406 = vmul.f32 %v382, %v404
        %409 = vrot.lane.b32.xlu0 %v405, 126
        %v410 = vpop.permute.xlu0 %409
        %411 = vrot.lane.b32.xlu0 %v406, 126
        %v412 = vpop.permute.xlu0 %411
        %v415 = vadd.f32 %v401, %v410
        %v416 = vadd.f32 %v402, %v412
        %v417 = vld [vmem:[#allocation2 + $0x1] sm:$0xff]
        %v418 = vld [vmem:[#allocation2 + $0x9] sm:$0xff]
        %s419 = sld [smem:[#allocation10 + %s356]]
        %v420 = vstv %s419
        %v421 = vmul.f32 %v417, %v420
        %v422 = vmul.f32 %v418, %v420
        %v423 = vadd.f32 %v415, %v421
        %v424 = vadd.f32 %v416, %v422
        %s425 = sadd.s32 %s326, 4
        %s426 = smul.u32 %s425, 128
        %s427 = sadd.s32 %s426, %s331
        %s428 = sld [smem:[#allocation10 + %s427]]
        %v429 = vstv %s428
        %v430 = vmul.f32 %v417, %v429
        %v431 = vmul.f32 %v418, %v429
        %434 = vrot.lane.b32.xlu0 %v430, 127
        %v435 = vpop.permute.xlu0 %434
        %436 = vrot.lane.b32.xlu0 %v431, 127
        %v437 = vpop.permute.xlu0 %436
        %v440 = vadd.f32 %v423, %v435
        %v441 = vadd.f32 %v424, %v437
        %s442 = sadd.s32 %s326, 5
        %s443 = smul.u32 %s442, 128
        %s444 = sadd.s32 %s443, %s331
        %s445 = sld [smem:[#allocation10 + %s444]]
        %v446 = vstv %s445
        %v447 = vmul.f32 %v417, %v446
        %v448 = vmul.f32 %v418, %v446
        %451 = vrot.lane.b32.xlu0 %v447, 126
        %v452 = vpop.permute.xlu0 %451
        %453 = vrot.lane.b32.xlu0 %v448, 126
        %v454 = vpop.permute.xlu0 %453
        %v457 = vadd.f32 %v440, %v452
        %v458 = vadd.f32 %v441, %v454
        %v459 = vld [vmem:[#allocation2 + $0x2] sm:$0xff]
        %v460 = vld [vmem:[#allocation2 + $0xa] sm:$0xff]
        %s461 = sadd.s32 %s326, 6
        %s462 = smul.u32 %s461, 128
        %s463 = sadd.s32 %s462, %s331
        %s464 = sld [smem:[#allocation10 + %s463]]
        %v465 = vstv %s464
        %v466 = vmul.f32 %v459, %v465
        %v467 = vmul.f32 %v460, %v465
        %v468 = vadd.f32 %v457, %v466
        %v469 = vadd.f32 %v458, %v467
        %s470 = sadd.s32 %s326, 7
        %s471 = smul.u32 %s470, 128
        %s472 = sadd.s32 %s471, %s331
        %s473 = sld [smem:[#allocation10 + %s472]]
        %v474 = vstv %s473
        %v475 = vmul.f32 %v459, %v474
        %v476 = vmul.f32 %v460, %v474
        %479 = vrot.lane.b32.xlu0 %v475, 127
        %v480 = vpop.permute.xlu0 %479
        %481 = vrot.lane.b32.xlu0 %v476, 127
        %v482 = vpop.permute.xlu0 %481
        %v485 = vadd.f32 %v468, %v480
        %v486 = vadd.f32 %v469, %v482
        %s487 = sadd.s32 %s326, 8
        %s488 = smul.u32 %s487, 128
        %s489 = sadd.s32 %s488, %s331
        %s490 = sld [smem:[#allocation10 + %s489]]
        %v491 = vstv %s490
        %v492 = vmul.f32 %v459, %v491
        %v493 = vmul.f32 %v460, %v491
        %496 = vrot.lane.b32.xlu0 %v492, 126
        %v497 = vpop.permute.xlu0 %496
        %498 = vrot.lane.b32.xlu0 %v493, 126
        %v499 = vpop.permute.xlu0 %498
        %v502 = vadd.f32 %v485, %v497
        %v503 = vadd.f32 %v486, %v499
        %v504 = vmax.f32 %v502, 0.0
        %v505 = vmax.f32 %v503, 0.0
        %vm506 = vcmask 130048
        %507 = vst.msk [vmem:[%s312] sm:$0xff] %vm506, %v504
        %508 = vst.msk [vmem:[%s312 + $0x8] sm:$0xff] %vm506, %v505
        %s509 = sand.u32 %s157, 1
        %s510 = scalar_lea.sflag [#allocation5], %s509
        %s511 = sand.u32 %s157, 1
        %s512 = smul.addr %s511, 16
        %s513 = scalar_lea.vmem [#allocation13], %s512
        // Predicated region
        $region61: #{tpu_custom_call.1} parent=39 // pred_check
          %p514 = pneg %p167
        $region62: #{tpu_custom_call.1} parent=39 // pred_check_branch
          %516 = sbr.rel (%p514) target = $region64
        $region63: #{tpu_custom_call.1} parent=39 // pred_region
          %518 = vsyncadd %s510, 0
          %s519 = smul.addr %s30, 2
          %s520 = smul.addr %s29, 16
          %s521 = sadd.s32 %s519, %s520
          %s522 = smul.addr %s521, 8
          %s523 = scalar_lea.hbm %s5, %s522
          %s524 = sshll.u32 %s513, 4
          %s525 = int_to_ptr.vmem [resolvable:$true] %s524
          %s526 = sshll.u32 %s523, 4
          %s527 = int_to_ptr.hbm [resolvable:$true] %s526
          %532 = dma.vmem_to_hbm [thread:$0]  %s525, 256, %s527, %s510, 128, 128, 8
        $region64: #{tpu_custom_call.1} parent=39 // pred_fallthru
          _
      $region40: #{tpu_custom_call.1} parent=5 // pred_fallthru
        _
      %p533 = scmp.le.s32.totalorder 2, %s20
      // Predicated region
      $region65: #{tpu_custom_call.1} parent=5 // pred_check
        %p534 = pneg %p533
      $region66: #{tpu_custom_call.1} parent=5 // pred_check_branch
        %536 = sbr.rel (%p534) target = $region68
      $region67: #{tpu_custom_call.1} parent=5 // pred_region
        %s537 = ssub.s32 %s20, 2
        // Predicated region
        $region69: #{tpu_custom_call.1} parent=67 // pred_check
          %p538 = pneg %p173
        $region70: #{tpu_custom_call.1} parent=67 // pred_check_branch
          %540 = sbr.rel (%p538) target = $region72
        $region71: #{tpu_custom_call.1} parent=67 // pred_region
          %s541 = sand.u32 %s158, 1
          %s542 = scalar_lea.sflag [#allocation5], %s541
          %s543 = sand.u32 %s158, 1
          %s544 = smul.addr %s543, 16
          %s545 = scalar_lea.vmem [#allocation13], %s544
          %547 = dma.done %s542, 256
        $region72: #{tpu_custom_call.1} parent=67 // pred_fallthru
          _
      $region68: #{tpu_custom_call.1} parent=5 // pred_fallthru
        _
    $region6: #{tpu_custom_call.1} parent=1 // loop_footer
      %s24 = sadd.s32 1, %s20
    $region7: #{tpu_custom_call.1} parent=1 // loop_footer_branch
      %19 = sbr.rel target = $region3
    $region8: #{tpu_custom_call.1} parent=1 // loop_exit
      _
    %548 = vsyncpa [#allocation4], 1
    %s549 = scalar_lea.sflag [#allocation4], 1
    %550 = vsyncpa %s549, 1
    %551 = vsyncpa [#allocation5], 1
    %s552 = scalar_lea.sflag [#allocation5], 1
    %553 = vsyncpa %s552, 1
    %554 = vsyncpa [#allocation6], 1
    %s555 = scalar_lea.sflag [#allocation6], 1
    %556 = vsyncpa %s555, 1
    %557 = vsyncpa [#allocation9], 1
    %558 = vsyncpa [#allocation12], 1

</llo_original>
